<compile_context>
chip_gen: v5e
topology: v5e:2x2
jax: 0.10.0
libtpu: 0.0.40
codegen_flags: <defaults>
</compile_context>

<pallas_src>
import functools
import math

import jax
import jax.numpy as jnp
from jax.experimental import pallas as pl
from jax.experimental.pallas import tpu as pltpu

# Preferred lane (last-dim) widths for the flattened slab, widest first.
_LANE_CHOICES = (8192, 4096, 2048, 1024, 512, 256, 128)
_TN = 1024                       # lane-tile width
_TILE_TARGET_BYTES = 2 * 1024 * 1024  # ~2 MiB per pipeline buffer
_TM_CAP = 4096


def _choose_2d_shape(total: int):
    """Pick a lane-dense (rows, cols) factorization of `total` elements.

    Returns (rows, cols, pad) where pad is the number of trailing padding
    elements needed (0 whenever a multiple-of-128 width divides `total`).
    """
    for lanes in _LANE_CHOICES:
        if total >= lanes and total % lanes == 0:
            return total // lanes, lanes, 0
    if total < 128:
        # Tiny array: a single row equal to the full extent (allowed by
        # Pallas since block == full dim).
        return 1, total, 0
    # Ragged fallback: pad only to the next multiple of 128, then re-run the
    # factorization search (128 always divides the padded total).
    padded = ((total + 127) // 128) * 128
    for lanes in _LANE_CHOICES:
        if padded >= lanes and padded % lanes == 0:
            return padded // lanes, lanes, padded - total
    return padded // 128, 128, padded - total  # unreachable; 128 divides


def _choose_tiles(rows: int, cols: int, max_itemsize: int):
    """Tile sizes: ~2 MiB per buffer, lane dim a multiple of 128."""
    tn = cols if cols <= _TN else _TN          # cols > _TN is always a multiple
    tm = _TILE_TARGET_BYTES // max(1, tn * max_itemsize)
    tm = max(8, (tm // 8) * 8)
    tm = min(tm, _TM_CAP)
    if rows <= tm:                             # full-extent block (always legal)
        tm = rows
    return tm, tn


def _add_weighted_kernel(src1_ref, src2_ref, out_ref, *, alpha, beta, gamma):
    # Elementwise VPU work on the current VMEM tile; compute in f32 for
    # precision parity with the PyTorch reference, cast back on the store.
    a = src1_ref[...].astype(jnp.float32)
    b = src2_ref[...].astype(jnp.float32)
    out_ref[...] = (a * alpha + b * beta + gamma).astype(out_ref.dtype)


def add_weighted(src1: jax.Array, alpha: float, src2: jax.Array,
                 beta: float, gamma: float) -> jax.Array:
    if src1.shape != src2.shape:
        raise ValueError("src1 and src2 must have the same shape")
    orig_shape = src1.shape
    total = int(math.prod(orig_shape)) if orig_shape else 1

    # PyTorch promotion: floating inputs keep their dtype; integer inputs
    # times a python float promote to the default float dtype (float32).
    res_dtype = jnp.result_type(src1.dtype, src2.dtype)
    if not jnp.issubdtype(res_dtype, jnp.floating):
        res_dtype = jnp.float32

    if total == 0:
        return jnp.zeros(orig_shape, res_dtype)

    rows, cols, pad = _choose_2d_shape(total)

    x1 = src1.reshape(-1)
    x2 = src2.reshape(-1)
    if pad:
        x1 = jnp.pad(x1, (0, pad))
        x2 = jnp.pad(x2, (0, pad))
    x1 = x1.reshape(rows, cols)
    x2 = x2.reshape(rows, cols)

    max_itemsize = max(jnp.dtype(src1.dtype).itemsize,
                       jnp.dtype(src2.dtype).itemsize,
                       jnp.dtype(res_dtype).itemsize)
    tm, tn = _choose_tiles(rows, cols, max_itemsize)
    grid = (pl.cdiv(rows, tm), pl.cdiv(cols, tn))

    kernel = functools.partial(
        _add_weighted_kernel,
        alpha=float(alpha), beta=float(beta), gamma=float(gamma))

    bytes_accessed = total * (jnp.dtype(src1.dtype).itemsize
                              + jnp.dtype(src2.dtype).itemsize
                              + jnp.dtype(res_dtype).itemsize)
    cost = pl.CostEstimate(
        flops=4 * total,            # 2 mul + 2 add per element
        transcendentals=0,
        bytes_accessed=bytes_accessed)

    out = pl.pallas_call(
        kernel,
        out_shape=jax.ShapeDtypeStruct((rows, cols), res_dtype),
        grid_spec=pl.GridSpec(
            grid=grid,
            in_specs=[
                pl.BlockSpec((tm, tn), lambda i, j: (i, j)),
                pl.BlockSpec((tm, tn), lambda i, j: (i, j)),
            ],
            out_specs=pl.BlockSpec((tm, tn), lambda i, j: (i, j)),
        ),
        compiler_params=pltpu.CompilerParams(
            dimension_semantics=("parallel", "parallel")),
        cost_estimate=cost,
    )(x1, x2)

    out = out.reshape(-1)
    if pad:
        out = out[:total]
    return out.reshape(orig_shape)


class AddWeighted:
    """JAX/Pallas equivalent of the PyTorch AddWeighted module."""

    def __init__(self, alpha: float, beta: float, gamma: float):
        self.alpha = float(alpha)
        self.beta = float(beta)
        self.gamma = float(gamma)

    def __call__(self, src1: jax.Array, src2: jax.Array) -> jax.Array:
        return add_weighted(src1, self.alpha, src2, self.beta, self.gamma)


if __name__ == "__main__":
    key = jax.random.PRNGKey(0)
    k1, k2 = jax.random.split(key)
    B, C, H, W = 2, 4, 16, 16
    src1 = jax.random.uniform(k1, (B, C, H, W), dtype=jnp.float32)
    src2 = jax.random.uniform(k2, (B, C, H, W), dtype=jnp.float32)

    module = AddWeighted(0.5, 0.5, 1.0)
    out = jax.block_until_ready(module(src1, src2))

    ref = src1 * 0.5 + src2 * 0.5 + 1.0
    assert out.shape == (B, C, H, W)
    assert out.dtype == jnp.float32
    assert jnp.allclose(out, ref, atol=1e-6, rtol=1e-6)

    # Shape whose element count is not a multiple of 128 (2*3*14*14 = 1176):
    # exercises the pad-to-128 lane-dense fallback path.
    s1 = jax.random.uniform(k1, (2, 3, 14, 14), dtype=jnp.float32)
    s2 = jax.random.uniform(k2, (2, 3, 14, 14), dtype=jnp.float32)
    out2 = jax.block_until_ready(module(s1, s2))
    ref2 = s1 * 0.5 + s2 * 0.5 + 1.0
    assert jnp.allclose(out2, ref2, atol=1e-6, rtol=1e-6)

    # bf16 inputs: compute happens in f32 inside the kernel, output stays bf16.
    b1 = src1.astype(jnp.bfloat16)
    b2 = src2.astype(jnp.bfloat16)
    out3 = jax.block_until_ready(module(b1, b2))
    ref3 = (b1.astype(jnp.float32) * 0.5
            + b2.astype(jnp.float32) * 0.5 + 1.0).astype(jnp.bfloat16)
    assert out3.dtype == jnp.bfloat16
    assert jnp.allclose(out3.astype(jnp.float32), ref3.astype(jnp.float32),
                        atol=1e-2, rtol=1e-2)

    print("KERNEL_OK")
</pallas_src>

<mosaic_0001>
module attributes {stable_mosaic.version = 11 : i64} {
  func.func @_add_weighted_kernel(%arg0: i32, %arg1: i32, %arg2: memref<1x1024xf32, #tpu.memory_space<vmem>>, %arg3: memref<1x1024xf32, #tpu.memory_space<vmem>>, %arg4: memref<1x1024xf32, #tpu.memory_space<vmem>>) attributes {dimension_semantics = [#tpu.dimension_semantics<parallel>, #tpu.dimension_semantics<parallel>], iteration_bounds = array<i64: 1, 2>, scalar_prefetch = 0 : i64, scratch_operands = 0 : i64, tpu.core_type = #tpu.core_type<tc>, window_params = [{transform_indices = @transform_0, window_bounds = array<i64: 1, 1024>}, {transform_indices = @transform_1, window_bounds = array<i64: 1, 1024>}, {transform_indices = @transform_2, window_bounds = array<i64: 1, 1024>}]} {
    %c0 = arith.constant 0 : index
    %c0_0 = arith.constant 0 : index
    %0 = vector.load %arg2[%c0, %c0_0] : memref<1x1024xf32, #tpu.memory_space<vmem>>, vector<1x1024xf32>
    %c0_1 = arith.constant 0 : index
    %c0_2 = arith.constant 0 : index
    %1 = vector.load %arg3[%c0_1, %c0_2] : memref<1x1024xf32, #tpu.memory_space<vmem>>, vector<1x1024xf32>
    %cst = arith.constant 5.000000e-01 : f32
    %2 = vector.broadcast %cst : f32 to vector<1x1024xf32>
    %3 = arith.mulf %0, %2 : vector<1x1024xf32>
    %cst_3 = arith.constant 5.000000e-01 : f32
    %4 = vector.broadcast %cst_3 : f32 to vector<1x1024xf32>
    %5 = arith.mulf %1, %4 : vector<1x1024xf32>
    %6 = arith.addf %3, %5 : vector<1x1024xf32>
    %cst_4 = arith.constant 1.000000e+00 : f32
    %7 = vector.broadcast %cst_4 : f32 to vector<1x1024xf32>
    %8 = arith.addf %6, %7 : vector<1x1024xf32>
    %c0_5 = arith.constant 0 : index
    %c0_6 = arith.constant 0 : index
    %9 = vector.load %arg4[%c0_5, %c0_6] : memref<1x1024xf32, #tpu.memory_space<vmem>>, vector<1x1024xf32>
    tpu.vector_store %arg4[%c0_5, %c0_6], %8 {strides = array<i32>} : memref<1x1024xf32, #tpu.memory_space<vmem>>, vector<1x1024xf32>,
    return
  }
  func.func @transform_0(%arg0: i32, %arg1: i32) -> (i32, i32) {
    %c0_i32 = arith.constant 0 : i32
    return %arg0, %arg1 : i32, i32
  }
  func.func @transform_1(%arg0: i32, %arg1: i32) -> (i32, i32) {
    %c0_i32 = arith.constant 0 : i32
    return %arg0, %arg1 : i32, i32
  }
  func.func @transform_2(%arg0: i32, %arg1: i32) -> (i32, i32) {
    %c0_i32 = arith.constant 0 : i32
    return %arg0, %arg1 : i32, i32
  }
}

</mosaic_0001>

<llo_original>
// kernel: tpu_custom_call.1
$region0: #{tpu_custom_call.1}
  #allocation0 [shape = 'u32[]', space=smem, size = 0x4, offset = 0x4, fixed_abs, tag = 'smem constant byte address 0x4 - core index']
  #allocation1 [shape = 'u32[72,128]{1,0:T(1,128)}', space=vmem, size = 0x9000, scoped, tag = 'internal scratch']
  %s0 = inlined_call_operand.hbm [shape: f32[1,2048], index: 0, kind: input, shape index: {}]
  %s1 = inlined_call_operand.hbm [shape: f32[1,2048], index: 1, kind: input, shape index: {}]
  %s2 = inlined_call_operand.hbm [shape: f32[1,2048], index: 2, kind: output, shape index: {}]
  %s3 = sld [smem:[#allocation0]]
  $region49: #{tpu_custom_call.1} parent=0
    _
  %s5 = ssub.s32 1, %s3
  %s6 = scalar_select 0, %s5, %s3
  $region1: #{tpu_custom_call.1} parent=0
    #allocation2 [shape = 'u8[8192]{0}', space=vmem, size = 0x2000, scoped, tag = 'input window, operand 0']
    #allocation3 [shape = 's32[2]{0}', space=sflag, size = 0x8, scoped, tag = 'scoped memory for tpu_custom_call.1']
    #allocation4 [shape = 's32[2]{0}', space=sflag, size = 0x8, scoped, tag = 'scoped memory for tpu_custom_call.1']
    #allocation5 [shape = 'u8[8192]{0}', space=vmem, size = 0x2000, scoped, tag = 'input window, operand 1']
    #allocation6 [shape = 's32[2]{0}', space=sflag, size = 0x8, scoped, tag = 'scoped memory for tpu_custom_call.1']
    #allocation7 [shape = 'u8[8192]{0}', space=vmem, size = 0x2000, scoped, tag = 'output window, operand 0']
    %7 = vsyncpa [#allocation3], 0
    %s8 = scalar_lea.sflag [#allocation3], 1
    %9 = vsyncpa %s8, 0
    %10 = vsyncpa [#allocation6], 0
    %s11 = scalar_lea.sflag [#allocation6], 1
    %12 = vsyncpa %s11, 0
    %13 = vsyncpa [#allocation4], 0
    %s14 = scalar_lea.sflag [#allocation4], 1
    %15 = vsyncpa %s14, 0
    loop: start=0, step=1, limit=4
    $region2: #{tpu_custom_call.1} parent=1 // loop_pre_header
      _
    $region3: #{tpu_custom_call.1} parent=1 // loop_header
      %s17 = sphi 0, %s21
      %p18 = scmp.ge.s32.totalorder %s17, 4
      %s24 = sphi 0, %s36
      %s25 = sphi 0, %s32
      %s26 = sphi 0, %s24
      %s27 = sphi 0, %s25
      %s28 = sphi 0, %s26
      %s29 = sphi 0, %s27
      %s41 = sphi 0, %s43
      %s44 = sphi 0, %s41
      %s45 = sphi 0, %s44
      %s61 = sphi 0, %s45
      %s69 = sphi 0, %s71
      %s72 = sphi 0, %s69
      %s73 = sphi 0, %s72
      %s89 = sphi 0, %s73
      %s97 = sphi 0, %s99
      %s100 = sphi 0, %s97
      %s101 = sphi 0, %s100
      %s117 = sphi 0, %s101
    $region4: #{tpu_custom_call.1} parent=1 // loop_header_branch
      %20 = sbr.rel (%p18) target = $region8
    $region5: #{tpu_custom_call.1} parent=1 // loop_body
      %s22 = ssub.s32 %s17, 1
      %s23 = ssub.s32 %s17, 2
      %s30 = sadd.s32 1, %s25
      %p31 = scmp.ge.s32.totalorder %s30, 2
      %s32 = scalar_select %p31, 0, %s30
      %s33 = sadd.s32 1, %s24
      %s34 = scalar_select %p31, %s33, %s24
      %p35 = scmp.ge.s32.totalorder %s34, 1
      %s36 = scalar_select %p35, 0, %s34
      %s37 = ssub.s32 %s24, %s36
      %s38 = ssub.s32 %s25, %s32
      %s39 = sor.u32 %s37, %s38
      %p40 = scmp.eq.s32.totalorder %s39, 0
      %s42 = sadd.s32 %s41, 1
      %s43 = scalar_select %p40, %s41, %s42
      %p46 = pneg %p40
      %p47 = scmp.eq.s32.totalorder %s17, 1
      %p48 = por %p46, %p47
      %p49 = scmp.ne.s32.totalorder %s41, %s44
      %p50 = scmp.eq.s32.totalorder %s17, 0
      %p51 = por %p49, %p50
      %p52 = scmp.ne.s32.totalorder %s41, %s44
      %p53 = scmp.eq.s32.totalorder %s22, 1
      %p54 = por %p52, %p53
      %p55 = scmp.ne.s32.totalorder %s44, %s45
      %p56 = scmp.eq.s32.totalorder %s22, 0
      %p57 = por %p55, %p56
      %p58 = scmp.ne.s32.totalorder %s44, %s45
      %p59 = scmp.eq.s32.totalorder %s23, 1
      %p60 = por %p58, %p59
      %p62 = scmp.ne.s32.totalorder %s45, %s61
      %p63 = scmp.eq.s32.totalorder %s23, 0
      %p64 = por %p62, %p63
      %s65 = ssub.s32 %s24, %s36
      %s66 = ssub.s32 %s25, %s32
      %s67 = sor.u32 %s65, %s66
      %p68 = scmp.eq.s32.totalorder %s67, 0
      %s70 = sadd.s32 %s69, 1
      %s71 = scalar_select %p68, %s69, %s70
      %p74 = pneg %p68
      %p75 = scmp.eq.s32.totalorder %s17, 1
      %p76 = por %p74, %p75
      %p77 = scmp.ne.s32.totalorder %s69, %s72
      %p78 = scmp.eq.s32.totalorder %s17, 0
      %p79 = por %p77, %p78
      %p80 = scmp.ne.s32.totalorder %s69, %s72
      %p81 = scmp.eq.s32.totalorder %s22, 1
      %p82 = por %p80, %p81
      %p83 = scmp.ne.s32.totalorder %s72, %s73
      %p84 = scmp.eq.s32.totalorder %s22, 0
      %p85 = por %p83, %p84
      %p86 = scmp.ne.s32.totalorder %s72, %s73
      %p87 = scmp.eq.s32.totalorder %s23, 1
      %p88 = por %p86, %p87
      %p90 = scmp.ne.s32.totalorder %s73, %s89
      %p91 = scmp.eq.s32.totalorder %s23, 0
      %p92 = por %p90, %p91
      %s93 = ssub.s32 %s24, %s36
      %s94 = ssub.s32 %s25, %s32
      %s95 = sor.u32 %s93, %s94
      %p96 = scmp.eq.s32.totalorder %s95, 0
      %s98 = sadd.s32 %s97, 1
      %s99 = scalar_select %p96, %s97, %s98
      %p102 = pneg %p96
      %p103 = scmp.eq.s32.totalorder %s17, 1
      %p104 = por %p102, %p103
      %p105 = scmp.ne.s32.totalorder %s97, %s100
      %p106 = scmp.eq.s32.totalorder %s17, 0
      %p107 = por %p105, %p106
      %p108 = scmp.ne.s32.totalorder %s97, %s100
      %p109 = scmp.eq.s32.totalorder %s22, 1
      %p110 = por %p108, %p109
      %p111 = scmp.ne.s32.totalorder %s100, %s101
      %p112 = scmp.eq.s32.totalorder %s22, 0
      %p113 = por %p111, %p112
      %p114 = scmp.ne.s32.totalorder %s100, %s101
      %p115 = scmp.eq.s32.totalorder %s23, 1
      %p116 = por %p114, %p115
      %p118 = scmp.ne.s32.totalorder %s101, %s117
      %p119 = scmp.eq.s32.totalorder %s23, 0
      %p120 = por %p118, %p119
      %p121 = scmp.le.s32.totalorder 1, %s17
      %p122 = scmp.lt.s32.totalorder %s17, 3
      %p123 = pnand %p121, %p122
      %p124 = pneg %p123
      // Predicated region
      $region9: #{tpu_custom_call.1} parent=5 // pred_check
        _
      $region10: #{tpu_custom_call.1} parent=5 // pred_check_branch
        %126 = sbr.rel (%p123) target = $region12
      $region11: #{tpu_custom_call.1} parent=5 // pred_region
        %s127 = ssub.s32 %s17, 1
      $region12: #{tpu_custom_call.1} parent=5 // pred_fallthru
        _
      %p128 = scmp.lt.s32.totalorder %s17, 2
      // Predicated region
      $region13: #{tpu_custom_call.1} parent=5 // pred_check
        %p129 = pneg %p128
      $region14: #{tpu_custom_call.1} parent=5 // pred_check_branch
        %131 = sbr.rel (%p129) target = $region16
      $region15: #{tpu_custom_call.1} parent=5 // pred_region
        // Predicated region
        $region17: #{tpu_custom_call.1} parent=15 // pred_check
          %p132 = pneg %p51
        $region18: #{tpu_custom_call.1} parent=15 // pred_check_branch
          %134 = sbr.rel (%p132) target = $region20
        $region19: #{tpu_custom_call.1} parent=15 // pred_region
          %s135 = sand.u32 %s41, 1
          %s136 = scalar_lea.sflag [#allocation3], %s135
          %s137 = sand.u32 %s41, 1
          %s138 = smul.addr %s137, 8
          %s139 = scalar_lea.vmem [#allocation2], %s138
          %s140 = smul.u32 8, %s25
          %142 = vsyncadd %s136, 0
          %s143 = smul.addr %s24, 16
          %s144 = sadd.s32 %s140, %s143
          %s145 = scalar_lea.hbm %s0, %s144
          %s147 = sshll.u32 %s145, 4
          %s148 = int_to_ptr.hbm [resolvable:$true] %s147
          %s149 = sshll.u32 %s139, 4
          %s150 = int_to_ptr.vmem [resolvable:$true] %s149
          %152 = dma.hbm_to_vmem [thread:$0]  %s148, 128, %s150, %s136
        $region20: #{tpu_custom_call.1} parent=15 // pred_fallthru
          _
        // Predicated region
        $region21: #{tpu_custom_call.1} parent=15 // pred_check
          %p153 = pneg %p79
        $region22: #{tpu_custom_call.1} parent=15 // pred_check_branch
          %155 = sbr.rel (%p153) target = $region24
        $region23: #{tpu_custom_call.1} parent=15 // pred_region
          %s156 = sand.u32 %s69, 1
          %s157 = scalar_lea.sflag [#allocation6], %s156
          %s158 = sand.u32 %s69, 1
          %s159 = smul.addr %s158, 8
          %s160 = scalar_lea.vmem [#allocation5], %s159
          %s161 = smul.u32 8, %s25
          %163 = vsyncadd %s157, 0
          %s164 = smul.addr %s24, 16
          %s165 = sadd.s32 %s161, %s164
          %s166 = scalar_lea.hbm %s1, %s165
          %s168 = sshll.u32 %s166, 4
          %s169 = int_to_ptr.hbm [resolvable:$true] %s168
          %s170 = sshll.u32 %s160, 4
          %s171 = int_to_ptr.vmem [resolvable:$true] %s170
          %173 = dma.hbm_to_vmem [thread:$0]  %s169, 128, %s171, %s157
        $region24: #{tpu_custom_call.1} parent=15 // pred_fallthru
          _
      $region16: #{tpu_custom_call.1} parent=5 // pred_fallthru
        _
      %p174 = scmp.le.s32.totalorder 1, %s17
      %p175 = scmp.lt.s32.totalorder %s17, 3
      %p176 = pnand %p174, %p175
      %p177 = pneg %p176
      // Predicated region
      $region25: #{tpu_custom_call.1} parent=5 // pred_check
        _
      $region26: #{tpu_custom_call.1} parent=5 // pred_check_branch
        %179 = sbr.rel (%p176) target = $region28
      $region27: #{tpu_custom_call.1} parent=5 // pred_region
        %s180 = ssub.s32 %s17, 1
        %s181 = sand.u32 %s44, 1
        %s182 = scalar_lea.sflag [#allocation3], %s181
        %s183 = sand.u32 %s44, 1
        %s184 = smul.addr %s183, 8
        %s185 = scalar_lea.vmem [#allocation2], %s184
        // Predicated region
        $region29: #{tpu_custom_call.1} parent=27 // pred_check
          %p186 = pneg %p57
        $region30: #{tpu_custom_call.1} parent=27 // pred_check_branch
          %188 = sbr.rel (%p186) target = $region32
        $region31: #{tpu_custom_call.1} parent=27 // pred_region
          %190 = dma.done %s182, 128
        $region32: #{tpu_custom_call.1} parent=27 // pred_fallthru
          _
        %s191 = sand.u32 %s72, 1
        %s192 = scalar_lea.sflag [#allocation6], %s191
        %s193 = sand.u32 %s72, 1
        %s194 = smul.addr %s193, 8
        %s195 = scalar_lea.vmem [#allocation5], %s194
        // Predicated region
        $region33: #{tpu_custom_call.1} parent=27 // pred_check
          %p196 = pneg %p85
        $region34: #{tpu_custom_call.1} parent=27 // pred_check_branch
          %198 = sbr.rel (%p196) target = $region36
        $region35: #{tpu_custom_call.1} parent=27 // pred_region
          %200 = dma.done %s192, 128
        $region36: #{tpu_custom_call.1} parent=27 // pred_fallthru
          _
        %s201 = sand.u32 %s44, 1
        %s202 = scalar_lea.sflag [#allocation3], %s201
        %s203 = sand.u32 %s44, 1
        %s204 = smul.addr %s203, 8
        %s205 = scalar_lea.vmem [#allocation2], %s204
        %p206 = pneg %p57
        %p207 = pneg %p54
        %s208 = sand.u32 %s72, 1
        %s209 = scalar_lea.sflag [#allocation6], %s208
        %s210 = sand.u32 %s72, 1
        %s211 = smul.addr %s210, 8
        %s212 = scalar_lea.vmem [#allocation5], %s211
        %p213 = pneg %p85
        %p214 = pneg %p82
        %p215 = pneg %p113
        %p216 = pneg %p110
        %s217 = sand.u32 %s100, 1
        %s218 = scalar_lea.sflag [#allocation4], %s217
        %s219 = sand.u32 %s100, 1
        %s220 = smul.addr %s219, 8
        %s221 = scalar_lea.vmem [#allocation7], %s220
        %s222 = smul.u32 8, %s27
        %s223 = smul.u32 8, %s27
        %s224 = smul.u32 8, %s27
        %v225 = vld [vmem:[%s185] sm:$0xff]
        %v226 = vld [vmem:[%s195] sm:$0xff]
        %v227 = vmul.f32 %v225, 0.5
        %v228 = vmul.f32 %v226, 0.5
        %v229 = vadd.f32 %v227, %v228
        %v230 = vadd.f32 %v229, 1.0
        %231 = vst [vmem:[%s221] sm:$0xff] %v230
        %s232 = sand.u32 %s100, 1
        %s233 = scalar_lea.sflag [#allocation4], %s232
        %s234 = sand.u32 %s100, 1
        %s235 = smul.addr %s234, 8
        %s236 = scalar_lea.vmem [#allocation7], %s235
        // Predicated region
        $region37: #{tpu_custom_call.1} parent=27 // pred_check
          %p237 = pneg %p110
        $region38: #{tpu_custom_call.1} parent=27 // pred_check_branch
          %239 = sbr.rel (%p237) target = $region40
        $region39: #{tpu_custom_call.1} parent=27 // pred_region
          %s240 = smul.u32 8, %s27
          %242 = vsyncadd %s233, 0
          %s243 = smul.addr %s26, 16
          %s244 = sadd.s32 %s240, %s243
          %s245 = scalar_lea.hbm %s2, %s244
          %s247 = sshll.u32 %s236, 4
          %s248 = int_to_ptr.vmem [resolvable:$true] %s247
          %s249 = sshll.u32 %s245, 4
          %s250 = int_to_ptr.hbm [resolvable:$true] %s249
          %252 = dma.vmem_to_hbm [thread:$0]  %s248, 128, %s250, %s233
        $region40: #{tpu_custom_call.1} parent=27 // pred_fallthru
          _
      $region28: #{tpu_custom_call.1} parent=5 // pred_fallthru
        _
      %p253 = scmp.le.s32.totalorder 2, %s17
      // Predicated region
      $region41: #{tpu_custom_call.1} parent=5 // pred_check
        %p254 = pneg %p253
      $region42: #{tpu_custom_call.1} parent=5 // pred_check_branch
        %256 = sbr.rel (%p254) target = $region44
      $region43: #{tpu_custom_call.1} parent=5 // pred_region
        %s257 = ssub.s32 %s17, 2
        // Predicated region
        $region45: #{tpu_custom_call.1} parent=43 // pred_check
          %p258 = pneg %p116
        $region46: #{tpu_custom_call.1} parent=43 // pred_check_branch
          %260 = sbr.rel (%p258) target = $region48
        $region47: #{tpu_custom_call.1} parent=43 // pred_region
          %s261 = sand.u32 %s101, 1
          %s262 = scalar_lea.sflag [#allocation4], %s261
          %s263 = sand.u32 %s101, 1
          %s264 = smul.addr %s263, 8
          %s265 = scalar_lea.vmem [#allocation7], %s264
          %267 = dma.done %s262, 128
        $region48: #{tpu_custom_call.1} parent=43 // pred_fallthru
          _
      $region44: #{tpu_custom_call.1} parent=5 // pred_fallthru
        _
    $region6: #{tpu_custom_call.1} parent=1 // loop_footer
      %s21 = sadd.s32 1, %s17
    $region7: #{tpu_custom_call.1} parent=1 // loop_footer_branch
      %16 = sbr.rel target = $region3
    $region8: #{tpu_custom_call.1} parent=1 // loop_exit
      _
    %268 = vsyncpa [#allocation3], 1
    %s269 = scalar_lea.sflag [#allocation3], 1
    %270 = vsyncpa %s269, 1
    %271 = vsyncpa [#allocation6], 1
    %s272 = scalar_lea.sflag [#allocation6], 1
    %273 = vsyncpa %s272, 1
    %274 = vsyncpa [#allocation4], 1
    %s275 = scalar_lea.sflag [#allocation4], 1
    %276 = vsyncpa %s275, 1

</llo_original>
